<compile_context>
chip_gen: v7x
topology: tpu7x:2x2x1
jax: 0.10.0
libtpu: 0.0.40
codegen_flags: <defaults>
</compile_context>

<pallas_src>
import jax
import jax.numpy as jnp
from jax.experimental import pallas as pl
from jax.experimental.pallas import tpu as pltpu


def _round_up(n, m):
    return ((n + m - 1) // m) * m


def _cdiv(a, b):
    return -(-a // b)


_TILE_B_MAX = 8192                    # rows per grid step (output block ~4 MiB f32)
_VMEM_LIMIT_BYTES = 32 * 1024 * 1024  # covers 2x(x + out) buffers at tb=8192 (~16 MiB)
_SMALL_BATCH_THRESHOLD = 512          # below this, plain XLA beats any pallas_call


def _fused_linear_kernel(x_ref, w_ref, b_ref, o_ref):
    # x_ref: (tb, 1), w_ref: (1, T_pad), b_ref: (1, T_pad), o_ref: (tb, T_pad)
    # out[b, j] = x[b, 0] * w[0, j] + bias[0, j]   == Linear(1, T) fused across heads.
    x_col = x_ref[...]                                   # hoist the (tb, 1) load
    o_ref[...] = (x_col * w_ref[...] + b_ref[...]).astype(o_ref.dtype)


def fused_linears_pallas(x, w_cat_pad, b_cat_pad, *,
                         tile_b_max=_TILE_B_MAX, min_steps=2):
    """x: (B, 1) f32; w_cat_pad / b_cat_pad: (1, T_pad) f32 with T_pad % 128 == 0.

    Returns the padded (B_pad, T_pad) f32 slab; the caller slices the true rows/cols.
    """
    B = x.shape[0]
    T_pad = w_cat_pad.shape[1]
    assert T_pad % 128 == 0, "lane axis must be padded to a multiple of 128"

    # Padding-aware tile selection: fix the step count first (>=2 so v7x's second
    # TensorCore is never idle), then the smallest 8-aligned tile covering B.
    # Guarantees tb <= tile_b_max and batch padding < steps * 8 rows.
    steps = max(min_steps, _cdiv(B, tile_b_max))
    tb = _round_up(_cdiv(B, steps), 8)
    B_pad = steps * tb
    if B_pad != B:
        x = jnp.pad(x, ((0, B_pad - B), (0, 0)))

    out_pad = pl.pallas_call(
        _fused_linear_kernel,
        out_shape=jax.ShapeDtypeStruct((B_pad, T_pad), jnp.float32),
        grid=(steps,),
        in_specs=[
            pl.BlockSpec((tb, 1), lambda i: (i, 0)),      # x: streamed per batch tile
            pl.BlockSpec((1, T_pad), lambda i: (0, 0)),   # weights: VMEM-resident
            pl.BlockSpec((1, T_pad), lambda i: (0, 0)),   # bias:    VMEM-resident
        ],
        out_specs=pl.BlockSpec((tb, T_pad), lambda i: (i, 0)),
        compiler_params=pltpu.CompilerParams(
            dimension_semantics=("parallel",),            # split batch across v7x TCs
            vmem_limit_bytes=_VMEM_LIMIT_BYTES,           # budget incl. lane-padded x
        ),
    )(x, w_cat_pad, b_cat_pad)
    return out_pad


class LearnableInputsPallas:
    """JAX/Pallas port of the PyTorch `learnableInputs` module."""

    def __init__(self, num_modes=12, num_slices=10, key=None,
                 small_batch_threshold=_SMALL_BATCH_THRESHOLD):
        self.num_modes = num_modes
        self.num_slices = num_slices
        self.small_batch_threshold = small_batch_threshold
        if key is None:
            key = jax.random.PRNGKey(0)

        # Deterministic init mimicking torch.nn.Linear default:
        # uniform(-1/sqrt(fan_in), 1/sqrt(fan_in)) with fan_in = 1 -> uniform(-1, 1).
        sizes = {
            "modes": num_modes,
            "volume_shift": 3,
            "x_shift": num_slices,
            "y_shift": num_slices,
            "volume_rotations": 3,
            "axis_parameters": 3,
        }
        ws, bs = {}, {}
        keys = jax.random.split(key, 2 * len(sizes))
        for i, (name, n) in enumerate(sizes.items()):
            ws[name] = jax.random.uniform(keys[2 * i], (n,), jnp.float32, -1.0, 1.0)
            bs[name] = jax.random.uniform(keys[2 * i + 1], (n,), jnp.float32, -1.0, 1.0)
        # axis_parameters_layer.weight.fill_(1.0), bias.fill_(0.0)
        ws["axis_parameters"] = jnp.ones((3,), jnp.float32)
        bs["axis_parameters"] = jnp.zeros((3,), jnp.float32)

        order = ["modes", "volume_shift", "x_shift", "y_shift",
                 "volume_rotations", "axis_parameters"]
        self._order = order
        self._sizes = [sizes[n] for n in order]
        self.T = sum(self._sizes)

        # Per-head start offsets in the concatenated row.
        offs, o = [], 0
        for s in self._sizes:
            offs.append(o)
            o += s
        self._offsets = offs

        w_cat = jnp.concatenate([ws[n] for n in order]).reshape(1, -1)
        b_cat = jnp.concatenate([bs[n] for n in order]).reshape(1, -1)
        self.w_cat = w_cat
        self.b_cat = b_cat

        # Zero-pad the lane axis to a multiple of 128 -> lane-dense output stores.
        self.T_pad = _round_up(self.T, 128)
        pad = self.T_pad - self.T
        self.w_cat_pad = jnp.pad(w_cat, ((0, 0), (0, pad)))
        self.b_cat_pad = jnp.pad(b_cat, ((0, 0), (0, pad)))

    def _split_heads(self, out, B):
        # `out` is (B_any >= B, >= T); slice heads directly (XLA fuses these slices,
        # no intermediate (B, T) materialization).
        o, s = self._offsets, self._sizes
        modes_output = out[:B, o[0]:o[0] + s[0]]                               # (B, num_modes)
        volume_shift = out[:B, o[1]:o[1] + s[1]].reshape(B, 1, 3)              # (B, 1, 3)
        x_shifts = out[:B, o[2]:o[2] + s[2]].reshape(B, self.num_slices, 1)    # (B, S, 1)
        y_shifts = out[:B, o[3]:o[3] + s[3]].reshape(B, self.num_slices, 1)    # (B, S, 1)
        volume_rotations = out[:B, o[4]:o[4] + s[4]].reshape(B, 1, 3)          # (B, 1, 3)
        axis_parameters = out[:B, o[5]:o[5] + s[5]]                            # (B, 3)
        return (modes_output, volume_shift, x_shifts, y_shifts,
                volume_rotations, axis_parameters)

    def __call__(self, x, *, force_pallas=False):
        # x: (B, 1) (the module's canonical input is a column of ones)
        x = x.astype(jnp.float32)
        B = x.shape[0]
        if (B < self.small_batch_threshold) and not force_pallas:
            # Tiny-batch fast path: a plain XLA broadcast multiply-add beats any
            # pallas_call launch and fuses with downstream consumers.
            out = x * self.w_cat + self.b_cat                  # (B, T)
        else:
            out = fused_linears_pallas(x, self.w_cat_pad, self.b_cat_pad)  # (B_pad, T_pad)
        return self._split_heads(out, B)


def _flatten(outs, B):
    return jnp.concatenate(
        [outs[0],
         outs[1].reshape(B, -1),
         outs[2].reshape(B, -1),
         outs[3].reshape(B, -1),
         outs[4].reshape(B, -1),
         outs[5]], axis=1)


if __name__ == "__main__":
    key = jax.random.PRNGKey(0)
    model = LearnableInputsPallas(num_modes=12, num_slices=10, key=key)

    # --- Small batch (the module's typical use: a column of ones). ------------------
    batch = 2
    x = jnp.ones((batch, 1), dtype=jnp.float32)
    ref = x @ model.w_cat + model.b_cat

    # Fast path (plain XLA).
    outs = jax.block_until_ready(model(x))
    assert jnp.allclose(_flatten(outs, batch), ref, atol=1e-6), "fast-path mismatch"

    # Same small batch forced through the Pallas kernel (exercises the kernel path).
    outs_k = jax.block_until_ready(model(x, force_pallas=True))
    assert jnp.allclose(_flatten(outs_k, batch), ref, atol=1e-6), "pallas mismatch (small)"

    # Shape checks matching the PyTorch forward.
    assert outs_k[0].shape == (batch, 12)
    assert outs_k[1].shape == (batch, 1, 3)
    assert outs_k[2].shape == (batch, 10, 1)
    assert outs_k[3].shape == (batch, 10, 1)
    assert outs_k[4].shape == (batch, 1, 3)
    assert outs_k[5].shape == (batch, 3)

    # --- Larger batch: multi-step grid, padding-aware tiling (only 8 padded rows). ---
    big_batch = 4096 + 24
    xb = jax.random.normal(jax.random.PRNGKey(1), (big_batch, 1), dtype=jnp.float32)
    outs_big = jax.block_until_ready(model(xb))
    ref_big = xb @ model.w_cat + model.b_cat
    assert jnp.allclose(_flatten(outs_big, big_batch), ref_big, atol=1e-5), \
        "pallas mismatch (big batch)"

    print("KERNEL_OK")
</pallas_src>

<mosaic_0001>
module attributes {stable_mosaic.version = 11 : i64} {
  func.func @_fused_linear_kernel(%arg0: i32, %arg1: memref<8x1xf32, #tpu.memory_space<vmem>>, %arg2: memref<1x128xf32, #tpu.memory_space<vmem>>, %arg3: memref<1x128xf32, #tpu.memory_space<vmem>>, %arg4: memref<8x128xf32, #tpu.memory_space<vmem>>) attributes {dimension_semantics = [#tpu.dimension_semantics<parallel>], iteration_bounds = array<i64: 2>, scalar_prefetch = 0 : i64, scratch_operands = 0 : i64, tpu.core_type = #tpu.core_type<tc>, window_params = [{transform_indices = @transform_0, window_bounds = array<i64: 8, 1>}, {pipeline_mode = #tpu.pipeline_mode<synchronous>, transform_indices = @transform_1, window_bounds = array<i64: 1, 128>}, {pipeline_mode = #tpu.pipeline_mode<synchronous>, transform_indices = @transform_2, window_bounds = array<i64: 1, 128>}, {transform_indices = @transform_3, window_bounds = array<i64: 8, 128>}]} {
    %c0 = arith.constant 0 : index
    %c0_0 = arith.constant 0 : index
    %0 = vector.load %arg1[%c0, %c0_0] : memref<8x1xf32, #tpu.memory_space<vmem>>, vector<8x1xf32>
    %c0_1 = arith.constant 0 : index
    %c0_2 = arith.constant 0 : index
    %1 = vector.load %arg2[%c0_1, %c0_2] : memref<1x128xf32, #tpu.memory_space<vmem>>, vector<1x128xf32>
    %2 = vector.broadcast %0 : vector<8x1xf32> to vector<8x128xf32>
    %3 = vector.broadcast %1 : vector<1x128xf32> to vector<8x128xf32>
    %4 = arith.mulf %2, %3 : vector<8x128xf32>
    %c0_3 = arith.constant 0 : index
    %c0_4 = arith.constant 0 : index
    %5 = vector.load %arg3[%c0_3, %c0_4] : memref<1x128xf32, #tpu.memory_space<vmem>>, vector<1x128xf32>
    %6 = vector.broadcast %5 : vector<1x128xf32> to vector<8x128xf32>
    %7 = arith.addf %4, %6 : vector<8x128xf32>
    %c0_5 = arith.constant 0 : index
    %c0_6 = arith.constant 0 : index
    %8 = vector.load %arg4[%c0_5, %c0_6] : memref<8x128xf32, #tpu.memory_space<vmem>>, vector<8x128xf32>
    tpu.vector_store %arg4[%c0_5, %c0_6], %7 {strides = array<i32>} : memref<8x128xf32, #tpu.memory_space<vmem>>, vector<8x128xf32>,
    return
  }
  func.func @transform_0(%arg0: i32) -> (i32, i32) {
    %c0_i32 = arith.constant 0 : i32
    %c0_i32_0 = arith.constant 0 : i32
    return %arg0, %c0_i32 : i32, i32
  }
  func.func @transform_1(%arg0: i32) -> (i32, i32) {
    %c0_i32 = arith.constant 0 : i32
    %c0_i32_0 = arith.constant 0 : i32
    %c0_i32_1 = arith.constant 0 : i32
    return %c0_i32, %c0_i32_0 : i32, i32
  }
  func.func @transform_2(%arg0: i32) -> (i32, i32) {
    %c0_i32 = arith.constant 0 : i32
    %c0_i32_0 = arith.constant 0 : i32
    %c0_i32_1 = arith.constant 0 : i32
    return %c0_i32, %c0_i32_0 : i32, i32
  }
  func.func @transform_3(%arg0: i32) -> (i32, i32) {
    %c0_i32 = arith.constant 0 : i32
    %c0_i32_0 = arith.constant 0 : i32
    return %arg0, %c0_i32 : i32, i32
  }
}

</mosaic_0001>

<llo_original>
// kernel: tpu_custom_call.1
$region0: #{tpu_custom_call.1}
  #allocation0 [shape = 'u32[]', space=smem, size = 0x4, offset = 0x4, fixed_abs, tag = 'smem constant byte address 0x4 - core index']
  #allocation1 [shape = 'u32[144,128]{1,0:T(1,128)}', space=vmem, size = 0x12000, scoped, tag = 'internal scratch']
  %s0 = inlined_call_operand.vmem [shape: f32[16,1], index: 0, kind: input, shape index: {}]
  %s1 = inlined_call_operand.vmem [shape: f32[1,128], index: 1, kind: input, shape index: {}]
  %s2 = inlined_call_operand.vmem [shape: f32[1,128], index: 2, kind: input, shape index: {}]
  %s3 = inlined_call_operand.hbm [shape: f32[16,128], index: 3, kind: output, shape index: {}]
  %s4 = sld [smem:[#allocation0]]
  $region45: #{tpu_custom_call.1} parent=0
    _
  %s6 = ssub.s32 1, %s4
  %s7 = scalar_select 0, %s6, %s4
  $region1: #{tpu_custom_call.1} parent=0
    #allocation2 [shape = 'u8[8192]{0}', space=vmem, size = 0x2000, scoped, tag = 'output window, operand 0']
    #allocation3 [shape = 's32[2]{0}', space=sflag, size = 0x8, scoped, tag = 'scoped memory for tpu_custom_call.1']
    %8 = vsyncpa [#allocation3], 0
    %s9 = scalar_lea.sflag [#allocation3], 1
    %10 = vsyncpa %s9, 0
    loop: start=0, step=1, limit=4
    $region2: #{tpu_custom_call.1} parent=1 // loop_pre_header
      _
    $region3: #{tpu_custom_call.1} parent=1 // loop_header
      %s12 = sphi 0, %s16
      %p13 = scmp.ge.s32.totalorder %s12, 4
      %s22 = sphi 0, %s24
      %s25 = sphi 0, %s22
      %s26 = sphi 0, %s25
      %s42 = sphi 0, %s26
      %s46 = sphi 0, %s46
      %s48 = sphi 0, %s46
      %s49 = sphi 0, %s48
      %s63 = sphi 0, %s49
      %s67 = sphi 0, %s67
      %s69 = sphi 0, %s67
      %s70 = sphi 0, %s69
      %s84 = sphi 0, %s70
      %s90 = sphi 0, %s92
      %s93 = sphi 0, %s90
      %s94 = sphi 0, %s93
      %s110 = sphi 0, %s94
    $region4: #{tpu_custom_call.1} parent=1 // loop_header_branch
      %15 = sbr.rel (%p13) target = $region8
    $region5: #{tpu_custom_call.1} parent=1 // loop_body
      %s17 = ssub.s32 %s12, 1
      %s18 = ssub.s32 %s12, 2
      %s19 = sadd.s32 %s12, 1
      %s20 = ssub.s32 %s12, %s19
      %p21 = scmp.eq.s32.totalorder %s20, 0
      %s23 = sadd.s32 %s22, 1
      %s24 = scalar_select %p21, %s22, %s23
      %p27 = pneg %p21
      %p28 = scmp.eq.s32.totalorder %s12, 1
      %p29 = por %p27, %p28
      %p30 = scmp.ne.s32.totalorder %s22, %s25
      %p31 = scmp.eq.s32.totalorder %s12, 0
      %p32 = por %p30, %p31
      %p33 = scmp.ne.s32.totalorder %s22, %s25
      %p34 = scmp.eq.s32.totalorder %s17, 1
      %p35 = por %p33, %p34
      %p36 = scmp.ne.s32.totalorder %s25, %s26
      %p37 = scmp.eq.s32.totalorder %s17, 0
      %p38 = por %p36, %p37
      %p39 = scmp.ne.s32.totalorder %s25, %s26
      %p40 = scmp.eq.s32.totalorder %s18, 1
      %p41 = por %p39, %p40
      %p43 = scmp.ne.s32.totalorder %s26, %s42
      %p44 = scmp.eq.s32.totalorder %s18, 0
      %p45 = por %p43, %p44
      %s47 = sadd.s32 %s46, 1
      %p50 = scmp.eq.s32.totalorder %s12, 1
      %p51 = scmp.ne.s32.totalorder %s46, %s48
      %p52 = scmp.eq.s32.totalorder %s12, 0
      %p53 = por %p51, %p52
      %p54 = scmp.ne.s32.totalorder %s46, %s48
      %p55 = scmp.eq.s32.totalorder %s17, 1
      %p56 = por %p54, %p55
      %p57 = scmp.ne.s32.totalorder %s48, %s49
      %p58 = scmp.eq.s32.totalorder %s17, 0
      %p59 = por %p57, %p58
      %p60 = scmp.ne.s32.totalorder %s48, %s49
      %p61 = scmp.eq.s32.totalorder %s18, 1
      %p62 = por %p60, %p61
      %p64 = scmp.ne.s32.totalorder %s49, %s63
      %p65 = scmp.eq.s32.totalorder %s18, 0
      %p66 = por %p64, %p65
      %s68 = sadd.s32 %s67, 1
      %p71 = scmp.eq.s32.totalorder %s12, 1
      %p72 = scmp.ne.s32.totalorder %s67, %s69
      %p73 = scmp.eq.s32.totalorder %s12, 0
      %p74 = por %p72, %p73
      %p75 = scmp.ne.s32.totalorder %s67, %s69
      %p76 = scmp.eq.s32.totalorder %s17, 1
      %p77 = por %p75, %p76
      %p78 = scmp.ne.s32.totalorder %s69, %s70
      %p79 = scmp.eq.s32.totalorder %s17, 0
      %p80 = por %p78, %p79
      %p81 = scmp.ne.s32.totalorder %s69, %s70
      %p82 = scmp.eq.s32.totalorder %s18, 1
      %p83 = por %p81, %p82
      %p85 = scmp.ne.s32.totalorder %s70, %s84
      %p86 = scmp.eq.s32.totalorder %s18, 0
      %p87 = por %p85, %p86
      %s88 = ssub.s32 %s12, %s19
      %p89 = scmp.eq.s32.totalorder %s88, 0
      %s91 = sadd.s32 %s90, 1
      %s92 = scalar_select %p89, %s90, %s91
      %p95 = pneg %p89
      %p96 = scmp.eq.s32.totalorder %s12, 1
      %p97 = por %p95, %p96
      %p98 = scmp.ne.s32.totalorder %s90, %s93
      %p99 = scmp.eq.s32.totalorder %s12, 0
      %p100 = por %p98, %p99
      %p101 = scmp.ne.s32.totalorder %s90, %s93
      %p102 = scmp.eq.s32.totalorder %s17, 1
      %p103 = por %p101, %p102
      %p104 = scmp.ne.s32.totalorder %s93, %s94
      %p105 = scmp.eq.s32.totalorder %s17, 0
      %p106 = por %p104, %p105
      %p107 = scmp.ne.s32.totalorder %s93, %s94
      %p108 = scmp.eq.s32.totalorder %s18, 1
      %p109 = por %p107, %p108
      %p111 = scmp.ne.s32.totalorder %s94, %s110
      %p112 = scmp.eq.s32.totalorder %s18, 0
      %p113 = por %p111, %p112
      %p114 = scmp.le.s32.totalorder 1, %s12
      %p115 = scmp.lt.s32.totalorder %s12, 3
      %p116 = pnand %p114, %p115
      %p117 = pneg %p116
      // Predicated region
      $region9: #{tpu_custom_call.1} parent=5 // pred_check
        _
      $region10: #{tpu_custom_call.1} parent=5 // pred_check_branch
        %119 = sbr.rel (%p116) target = $region12
      $region11: #{tpu_custom_call.1} parent=5 // pred_region
        %s120 = ssub.s32 %s12, 1
        // Predicated region
        $region13: #{tpu_custom_call.1} parent=11 // pred_check
          %p121 = pneg %p59
        $region14: #{tpu_custom_call.1} parent=11 // pred_check_branch
          %123 = sbr.rel (%p121) target = $region16
        $region15: #{tpu_custom_call.1} parent=11 // pred_region
          _
        $region16: #{tpu_custom_call.1} parent=11 // pred_fallthru
          _
        // Predicated region
        $region17: #{tpu_custom_call.1} parent=11 // pred_check
          %p124 = pneg %p80
        $region18: #{tpu_custom_call.1} parent=11 // pred_check_branch
          %126 = sbr.rel (%p124) target = $region20
        $region19: #{tpu_custom_call.1} parent=11 // pred_region
          _
        $region20: #{tpu_custom_call.1} parent=11 // pred_fallthru
          _
      $region12: #{tpu_custom_call.1} parent=5 // pred_fallthru
        _
      %p127 = scmp.lt.s32.totalorder %s12, 2
      // Predicated region
      $region21: #{tpu_custom_call.1} parent=5 // pred_check
        %p128 = pneg %p127
      $region22: #{tpu_custom_call.1} parent=5 // pred_check_branch
        %130 = sbr.rel (%p128) target = $region24
      $region23: #{tpu_custom_call.1} parent=5 // pred_region
        // Predicated region
        $region25: #{tpu_custom_call.1} parent=23 // pred_check
          %p131 = pneg %p32
        $region26: #{tpu_custom_call.1} parent=23 // pred_check_branch
          %133 = sbr.rel (%p131) target = $region28
        $region27: #{tpu_custom_call.1} parent=23 // pred_region
          %p134 = scmp.lt.s32.totalorder %s12, 1
          %s135 = scalar_select %p134, %s12, 1
          %s136 = smul.addr %s135, 8
          %s137 = scalar_lea.vmem %s0, %s136
        $region28: #{tpu_custom_call.1} parent=23 // pred_fallthru
          _
      $region24: #{tpu_custom_call.1} parent=5 // pred_fallthru
        _
      %p138 = scmp.le.s32.totalorder 1, %s12
      %p139 = scmp.lt.s32.totalorder %s12, 3
      %p140 = pnand %p138, %p139
      %p141 = pneg %p140
      // Predicated region
      $region29: #{tpu_custom_call.1} parent=5 // pred_check
        _
      $region30: #{tpu_custom_call.1} parent=5 // pred_check_branch
        %143 = sbr.rel (%p140) target = $region32
      $region31: #{tpu_custom_call.1} parent=5 // pred_region
        %s144 = ssub.s32 %s12, 1
        %p145 = scmp.lt.s32.totalorder %s17, 1
        %s146 = scalar_select %p145, %s17, 1
        %s147 = smul.addr %s146, 8
        %s148 = scalar_lea.vmem %s0, %s147
        %p149 = pneg %p38
        %p150 = pneg %p35
        %p151 = pneg %p59
        %p152 = pneg %p56
        %p153 = pneg %p80
        %p154 = pneg %p77
        %p155 = pneg %p106
        %p156 = pneg %p103
        %s157 = sand.u32 %s93, 1
        %s158 = scalar_lea.sflag [#allocation3], %s157
        %s159 = sand.u32 %s93, 1
        %s160 = smul.addr %s159, 8
        %s161 = scalar_lea.vmem [#allocation2], %s160
        %p162 = scmp.lt.s32.totalorder %s17, 1
        %s163 = scalar_select %p162, %s17, 1
        %s164 = smul.addr %s163, 8
        %s165 = scalar_lea.vmem %s0, %s164
        %v166 = vld [vmem:[%s165] sm:$0xff]
        %v167 = vld [vmem:[%s1] sm:$0x1]
        %169 = vset.pattern.permute.xlu0 0
        %170 = vperm.xlu0 %169, %v166
        %v171 = vpop.permute.xlu0 %170
        %v174 = vlaneseq
        %v175 = vshrl.u32 %v174, 7
        %v176 = vsub.s32 0, %v175
        %v177 = vrot.slane %v167, %v176
        %v179 = vmul.f32 %v171, %v177
        %v180 = vld [vmem:[%s2] sm:$0x1]
        %v182 = vlaneseq
        %v183 = vshrl.u32 %v182, 7
        %v184 = vsub.s32 0, %v183
        %v185 = vrot.slane %v180, %v184
        %v187 = vadd.f32 %v179, %v185
        %188 = vst [vmem:[%s161] sm:$0xff] %v187
        %s189 = sand.u32 %s93, 1
        %s190 = scalar_lea.sflag [#allocation3], %s189
        %s191 = sand.u32 %s93, 1
        %s192 = smul.addr %s191, 8
        %s193 = scalar_lea.vmem [#allocation2], %s192
        // Predicated region
        $region33: #{tpu_custom_call.1} parent=31 // pred_check
          %p194 = pneg %p103
        $region34: #{tpu_custom_call.1} parent=31 // pred_check_branch
          %196 = sbr.rel (%p194) target = $region36
        $region35: #{tpu_custom_call.1} parent=31 // pred_region
          %s198 = ssub.s32 128, 128
          %199 = vsyncadd %s190, %s198
          %s200 = smul.addr %s17, 128
          %s201 = scalar_lea.hbm %s3, %s200
          %s203 = sshll.u32 %s193, 4
          %s204 = int_to_ptr.vmem [resolvable:$true] %s203
          %206 = dma.vmem_to_hbm [thread:$0]  %s204, 128, %s201, %s190
        $region36: #{tpu_custom_call.1} parent=31 // pred_fallthru
          _
      $region32: #{tpu_custom_call.1} parent=5 // pred_fallthru
        _
      %p207 = scmp.le.s32.totalorder 2, %s12
      // Predicated region
      $region37: #{tpu_custom_call.1} parent=5 // pred_check
        %p208 = pneg %p207
      $region38: #{tpu_custom_call.1} parent=5 // pred_check_branch
        %210 = sbr.rel (%p208) target = $region40
      $region39: #{tpu_custom_call.1} parent=5 // pred_region
        %s211 = ssub.s32 %s12, 2
        // Predicated region
        $region41: #{tpu_custom_call.1} parent=39 // pred_check
          %p212 = pneg %p109
        $region42: #{tpu_custom_call.1} parent=39 // pred_check_branch
          %214 = sbr.rel (%p212) target = $region44
        $region43: #{tpu_custom_call.1} parent=39 // pred_region
          %s215 = sand.u32 %s94, 1
          %s216 = scalar_lea.sflag [#allocation3], %s215
          %s217 = sand.u32 %s94, 1
          %s218 = smul.addr %s217, 8
          %s219 = scalar_lea.vmem [#allocation2], %s218
          %220 = dma.done %s216, 128
        $region44: #{tpu_custom_call.1} parent=39 // pred_fallthru
          _
      $region40: #{tpu_custom_call.1} parent=5 // pred_fallthru
        _
    $region6: #{tpu_custom_call.1} parent=1 // loop_footer
      %s16 = sadd.s32 1, %s12
    $region7: #{tpu_custom_call.1} parent=1 // loop_footer_branch
      %11 = sbr.rel target = $region3
    $region8: #{tpu_custom_call.1} parent=1 // loop_exit
      _
    %221 = vsyncpa [#allocation3], 1
    %s222 = scalar_lea.sflag [#allocation3], 1
    %223 = vsyncpa %s222, 1

</llo_original>
